<compile_context>
chip_gen: v7x
topology: tpu7x:2x2x1
jax: 0.10.0
libtpu: 0.0.40
codegen_flags: <defaults>
</compile_context>

<pallas_src>
import functools

import jax
import jax.numpy as jnp
from jax.experimental import pallas as pl
from jax.experimental.pallas import tpu as pltpu


def _delete_gate_kernel(x_ref, c_ref, consts_ref, out_ref, *,
                        eps, scale, has_layer_norm):
    x = x_ref[...].astype(jnp.float32)                       # (TM, H) f32
    c = c_ref[...]                                           # (1, H)  f32
    k0 = consts_ref[0]                                       # scalar (SMEM)

    # Row reduction against fused weight vector (independent of mean/var).
    sc = jnp.sum(x * c, axis=-1, keepdims=True)              # (TM, 1)

    if has_layer_norm:
        sum_c = consts_ref[1]                                # scalar (SMEM)
        h_inv = jnp.float32(1.0 / x.shape[-1])
        s1 = jnp.sum(x, axis=-1, keepdims=True)              # (TM, 1)
        s2 = jnp.sum(x * x, axis=-1, keepdims=True)          # (TM, 1)
        mean = s1 * h_inv
        var = jnp.maximum(s2 * h_inv - mean * mean, 0.0)
        inv_std = jax.lax.rsqrt(var + eps)
        logits = inv_std * (sc - mean * sum_c) + k0
    else:
        logits = sc + k0

    # ScaledSigmoid: scale * sigmoid(-logits)
    gate = scale * jax.nn.sigmoid(-logits)

    # Single lane-packed output block: [:, 0] = gate, [:, 1] = logits.
    out_ref[...] = jnp.concatenate([gate, logits], axis=-1).astype(out_ref.dtype)


def sigmoid_delete_gate(hidden_states, input_ids, params, *,
                        sigmoid_mask_scale=-30.0, gate_layer_norm=True,
                        eps=1e-5, tm=1024):
    """hidden_states: (B, S, H) f32/bf16; input_ids: (B, S) int.
    Returns (gate_values, delete_gate_logits), both (B, S, 1) f32."""
    B, S, H = hidden_states.shape
    R = B * S
    x = hidden_states.reshape(R, H)

    # ---- fold LayerNorm affine + Linear into one (1,H) vector + two scalars ----
    w = params["w"].reshape(1, H).astype(jnp.float32)
    b = params["b"].reshape(()).astype(jnp.float32)
    if gate_layer_norm:
        gamma = params["ln_gamma"].reshape(1, H).astype(jnp.float32)
        beta = params["ln_beta"].reshape(1, H).astype(jnp.float32)
        c = gamma * w
        k0 = jnp.sum(beta * w) + b
        sum_c = jnp.sum(c)
    else:
        c = w
        k0 = b
        sum_c = jnp.float32(0.0)
    consts = jnp.stack([k0, sum_c]).astype(jnp.float32)       # (2,) -> SMEM

    # ---- generation-aware tile sizing ----
    dt_bytes = jnp.dtype(hidden_states.dtype).itemsize
    row_align = 16 if dt_bytes < 4 else 8                     # bf16 sublane pack
    try:
        vmem_cap = int(pltpu.get_tpu_info().vmem_capacity_bytes)
    except Exception:
        vmem_cap = 128 << 20
    small_vmem = vmem_cap <= (96 << 20)                       # v7x: 64 MiB/TC, 2 TCs

    # VMEM working set per tile row: double-buffered HBM tile + ~2 f32 temps
    # (upcast / elementwise products), regardless of HBM dtype.
    per_row_ws = H * (2 * dt_bytes + 2 * 4)
    ws_budget = (28 << 20) if small_vmem else (56 << 20)
    cap_rows = max(row_align, (ws_budget // per_row_ws) // row_align * row_align)

    tm = min(int(tm), cap_rows)
    r_aligned = ((R + row_align - 1) // row_align) * row_align
    tm = min(tm, r_aligned)                                   # don't over-tile tiny inputs
    if small_vmem and r_aligned >= 2 * row_align:
        # ensure >=2 tiles so the "parallel" axis splits across v7x's two TCs
        half = -(-R // 2)
        half = ((half + row_align - 1) // row_align) * row_align
        tm = min(tm, half)
    tm = max(row_align, (tm // row_align) * row_align)

    # Partial last block is clipped by Pallas: no jnp.pad copy of (R,H) in HBM.
    grid = (pl.cdiv(R, tm),)

    vmem_limit = tm * H * (2 * dt_bytes + 2 * 4) + (8 << 20)  # + c, outputs, scratch
    vmem_limit = int(min(max(vmem_limit, 16 << 20),
                         (40 << 20) if small_vmem else (100 << 20)))

    kernel = functools.partial(
        _delete_gate_kernel,
        eps=float(eps),
        scale=float(sigmoid_mask_scale),
        has_layer_norm=bool(gate_layer_norm),
    )

    out = pl.pallas_call(
        kernel,
        out_shape=jax.ShapeDtypeStruct((R, 2), jnp.float32),
        grid_spec=pltpu.PrefetchScalarGridSpec(
            num_scalar_prefetch=0,
            grid=grid,
            in_specs=[
                pl.BlockSpec((tm, H), lambda i: (i, 0)),      # hidden rows (streamed)
                pl.BlockSpec((1, H), lambda i: (0, 0)),       # fused weights c = gamma*w
                pl.BlockSpec(memory_space=pltpu.MemorySpace.SMEM),  # [k0, sum(c)]
            ],
            out_specs=pl.BlockSpec((tm, 2), lambda i: (i, 0)),
        ),
        compiler_params=pltpu.CompilerParams(
            dimension_semantics=("parallel",),
            vmem_limit_bytes=vmem_limit,
        ),
    )(x, c, consts)

    out = out.reshape(B, S, 2)
    gate = out[..., 0:1]
    logits = out[..., 1:2]

    # Pad override in the wrapper (trivial elementwise; XLA fuses it).
    # torch guards with .any(); where() is identity when no pads, so semantics match.
    pad_mask = (input_ids == 0)[..., None]
    gate = jnp.where(pad_mask, jnp.float32(sigmoid_mask_scale), gate)
    return gate, logits


def init_params(key, hidden_size):
    # Mirrors the module's __init__:
    #  - LayerNorm: weight=1, bias=0 (torch default)
    #  - Linear(H,1): xavier_uniform weight, bias filled with -1
    (kw,) = jax.random.split(key, 1)
    limit = (6.0 / (hidden_size + 1)) ** 0.5   # xavier_uniform bound for (1, H)
    w = jax.random.uniform(kw, (1, hidden_size), jnp.float32, -limit, limit)
    return {
        "ln_gamma": jnp.ones((hidden_size,), jnp.float32),
        "ln_beta": jnp.zeros((hidden_size,), jnp.float32),
        "w": w,
        "b": jnp.full((1,), -1.0, jnp.float32),
    }


def _reference(hidden_states, input_ids, params, scale, eps=1e-5, has_layer_norm=True):
    x = hidden_states
    if has_layer_norm:
        mean = jnp.mean(x, axis=-1, keepdims=True)
        var = jnp.mean((x - mean) ** 2, axis=-1, keepdims=True)
        x = (x - mean) / jnp.sqrt(var + eps)
        x = x * params["ln_gamma"] + params["ln_beta"]
    logits = x @ params["w"].reshape(-1, 1) + params["b"]
    gate = scale * jax.nn.sigmoid(-logits)
    pad = (input_ids == 0)[..., None]
    gate = jnp.where(pad, jnp.float32(scale), gate)
    return gate, logits


if __name__ == "__main__":
    scale = -30.0
    key = jax.random.PRNGKey(0)
    k1, k2, k3 = jax.random.split(key, 3)

    # --- case 1: B=2, S=8, H=32, LayerNorm path ---
    B, S, H = 2, 8, 32
    hidden_states = jax.random.normal(k1, (B, S, H), jnp.float32)
    input_ids = jax.random.randint(k2, (B, S), 0, 5, jnp.int32)  # includes pad (0) ids
    params = init_params(k3, H)

    gate, logits = sigmoid_delete_gate(
        hidden_states, input_ids, params,
        sigmoid_mask_scale=scale, gate_layer_norm=True)
    jax.block_until_ready((gate, logits))
    ref_gate, ref_logits = _reference(hidden_states, input_ids, params, scale,
                                      has_layer_norm=True)
    assert gate.shape == (B, S, 1) and logits.shape == (B, S, 1)
    assert jnp.allclose(gate, ref_gate, atol=1e-4, rtol=1e-4)
    assert jnp.allclose(logits, ref_logits, atol=1e-4, rtol=1e-4)

    # --- case 2: no-LayerNorm path ---
    gate2, logits2 = sigmoid_delete_gate(
        hidden_states, input_ids, params,
        sigmoid_mask_scale=scale, gate_layer_norm=False)
    jax.block_until_ready((gate2, logits2))
    ref_gate2, ref_logits2 = _reference(hidden_states, input_ids, params, scale,
                                        has_layer_norm=False)
    assert jnp.allclose(gate2, ref_gate2, atol=1e-4, rtol=1e-4)
    assert jnp.allclose(logits2, ref_logits2, atol=1e-4, rtol=1e-4)

    # --- case 3: ragged row count (R % tile != 0) exercises the clipped last block ---
    B3, S3 = 2, 7
    hs3 = jax.random.normal(jax.random.PRNGKey(1), (B3, S3, H), jnp.float32)
    ids3 = jax.random.randint(jax.random.PRNGKey(2), (B3, S3), 0, 3, jnp.int32)
    gate3, logits3 = sigmoid_delete_gate(
        hs3, ids3, params, sigmoid_mask_scale=scale, gate_layer_norm=True)
    jax.block_until_ready((gate3, logits3))
    ref_gate3, ref_logits3 = _reference(hs3, ids3, params, scale, has_layer_norm=True)
    assert jnp.allclose(gate3, ref_gate3, atol=1e-4, rtol=1e-4)
    assert jnp.allclose(logits3, ref_logits3, atol=1e-4, rtol=1e-4)

    print("KERNEL_OK")
</pallas_src>

<mosaic_0001>
module attributes {stable_mosaic.version = 11 : i64} {
  func.func @_delete_gate_kernel(%arg0: i32, %arg1: memref<16x32xf32, #tpu.memory_space<vmem>>, %arg2: memref<1x32xf32, #tpu.memory_space<vmem>>, %arg3: memref<2xf32, #tpu.memory_space<smem>>, %arg4: memref<16x2xf32, #tpu.memory_space<vmem>>) attributes {dimension_semantics = [#tpu.dimension_semantics<parallel>], iteration_bounds = array<i64: 1>, scalar_prefetch = 0 : i64, scratch_operands = 0 : i64, tpu.core_type = #tpu.core_type<tc>, window_params = [{transform_indices = @transform_0, window_bounds = array<i64: 16, 32>}, {pipeline_mode = #tpu.pipeline_mode<synchronous>, transform_indices = @transform_1, window_bounds = array<i64: 1, 32>}, {transform_indices = @transform_2, window_bounds = array<i64: 2>}, {transform_indices = @transform_3, window_bounds = array<i64: 16, 2>}]} {
    %c0 = arith.constant 0 : index
    %c0_0 = arith.constant 0 : index
    %0 = vector.load %arg1[%c0, %c0_0] : memref<16x32xf32, #tpu.memory_space<vmem>>, vector<16x32xf32>
    %c0_1 = arith.constant 0 : index
    %c0_2 = arith.constant 0 : index
    %1 = vector.load %arg2[%c0_1, %c0_2] : memref<1x32xf32, #tpu.memory_space<vmem>>, vector<1x32xf32>
    %c0_3 = arith.constant 0 : index
    %2 = memref.load %arg3[%c0_3] : memref<2xf32, #tpu.memory_space<smem>>
    %3 = vector.broadcast %1 : vector<1x32xf32> to vector<16x32xf32>
    %4 = arith.mulf %0, %3 : vector<16x32xf32>
    %cst = arith.constant dense<0.000000e+00> : vector<16xf32>
    %5 = vector.multi_reduction <add>, %4, %cst [1] : vector<16x32xf32> to vector<16xf32>
    %6 = vector.shape_cast %5 : vector<16xf32> to vector<16x1xf32>
    %c1 = arith.constant 1 : index
    %7 = memref.load %arg3[%c1] : memref<2xf32, #tpu.memory_space<smem>>
    %cst_4 = arith.constant dense<0.000000e+00> : vector<16xf32>
    %8 = vector.multi_reduction <add>, %0, %cst_4 [1] : vector<16x32xf32> to vector<16xf32>
    %9 = vector.shape_cast %8 : vector<16xf32> to vector<16x1xf32>
    %10 = arith.mulf %0, %0 : vector<16x32xf32>
    %cst_5 = arith.constant dense<0.000000e+00> : vector<16xf32>
    %11 = vector.multi_reduction <add>, %10, %cst_5 [1] : vector<16x32xf32> to vector<16xf32>
    %12 = vector.shape_cast %11 : vector<16xf32> to vector<16x1xf32>
    %cst_6 = arith.constant 3.125000e-02 : f32
    %13 = vector.broadcast %cst_6 : f32 to vector<16x1xf32>
    %14 = arith.mulf %9, %13 : vector<16x1xf32>
    %cst_7 = arith.constant 3.125000e-02 : f32
    %15 = vector.broadcast %cst_7 : f32 to vector<16x1xf32>
    %16 = arith.mulf %12, %15 : vector<16x1xf32>
    %17 = arith.mulf %14, %14 : vector<16x1xf32>
    %18 = arith.subf %16, %17 : vector<16x1xf32>
    %cst_8 = arith.constant 0.000000e+00 : f32
    %19 = vector.broadcast %cst_8 : f32 to vector<16x1xf32>
    %20 = arith.maximumf %18, %19 : vector<16x1xf32>
    %cst_9 = arith.constant 9.99999974E-6 : f32
    %21 = vector.broadcast %cst_9 : f32 to vector<16x1xf32>
    %22 = arith.addf %20, %21 : vector<16x1xf32>
    %23 = math.rsqrt %22 : vector<16x1xf32>
    %24 = vector.broadcast %7 : f32 to vector<16x1xf32>
    %25 = arith.mulf %14, %24 : vector<16x1xf32>
    %26 = arith.subf %6, %25 : vector<16x1xf32>
    %27 = arith.mulf %23, %26 : vector<16x1xf32>
    %28 = vector.broadcast %2 : f32 to vector<16x1xf32>
    %29 = arith.addf %27, %28 : vector<16x1xf32>
    %cst_10 = arith.constant 0.000000e+00 : f32
    %30 = vector.broadcast %cst_10 : f32 to vector<16x1xf32>
    %31 = arith.subf %30, %29 : vector<16x1xf32>
    %32 = arith.negf %31 : vector<16x1xf32>
    %33 = math.exp %32 : vector<16x1xf32>
    %cst_11 = arith.constant 1.000000e+00 : f32
    %34 = vector.broadcast %cst_11 : f32 to vector<16x1xf32>
    %35 = arith.addf %34, %33 : vector<16x1xf32>
    %36 = arith.divf %34, %35 : vector<16x1xf32>
    %cst_12 = arith.constant -3.000000e+01 : f32
    %37 = vector.broadcast %cst_12 : f32 to vector<16x1xf32>
    %38 = arith.mulf %37, %36 : vector<16x1xf32>
    %39 = tpu.concatenate %38, %29 in 1 : vector<16x1xf32>, vector<16x1xf32> -> vector<16x2xf32>
    %c0_13 = arith.constant 0 : index
    %c0_14 = arith.constant 0 : index
    %40 = vector.load %arg4[%c0_13, %c0_14] : memref<16x2xf32, #tpu.memory_space<vmem>>, vector<16x2xf32>
    tpu.vector_store %arg4[%c0_13, %c0_14], %39 {strides = array<i32>} : memref<16x2xf32, #tpu.memory_space<vmem>>, vector<16x2xf32>,
    return
  }
  func.func @transform_0(%arg0: i32) -> (i32, i32) {
    %c0_i32 = arith.constant 0 : i32
    %c0_i32_0 = arith.constant 0 : i32
    return %arg0, %c0_i32 : i32, i32
  }
  func.func @transform_1(%arg0: i32) -> (i32, i32) {
    %c0_i32 = arith.constant 0 : i32
    %c0_i32_0 = arith.constant 0 : i32
    %c0_i32_1 = arith.constant 0 : i32
    return %c0_i32, %c0_i32_0 : i32, i32
  }
  func.func @transform_2(%arg0: i32) -> i32 {
    %c0_i32 = arith.constant 0 : i32
    %c0_i32_0 = arith.constant 0 : i32
    return %c0_i32 : i32
  }
  func.func @transform_3(%arg0: i32) -> (i32, i32) {
    %c0_i32 = arith.constant 0 : i32
    %c0_i32_0 = arith.constant 0 : i32
    return %arg0, %c0_i32 : i32, i32
  }
}

</mosaic_0001>

<llo_original>
// kernel: tpu_custom_call.1
$region0: #{tpu_custom_call.1}
  #allocation0 [shape = 'u32[]', space=smem, size = 0x4, offset = 0x4, fixed_abs, tag = 'smem constant byte address 0x4 - core index']
  #allocation1 [shape = 'u32[144,128]{1,0:T(1,128)}', space=vmem, size = 0x12000, scoped, tag = 'internal scratch']
  %s0 = inlined_call_operand.hbm [shape: f32[16,32], index: 0, kind: input, shape index: {}]
  %s1 = inlined_call_operand.vmem [shape: f32[1,32], index: 1, kind: input, shape index: {}]
  %s2 = inlined_call_operand.vmem [shape: f32[2], index: 2, kind: input, shape index: {}]
  %s3 = inlined_call_operand.vmem [shape: f32[16,2], index: 3, kind: output, shape index: {}]
  %s4 = sld [smem:[#allocation0]]
  $region30: #{tpu_custom_call.1} parent=0
    _
  %s6 = ssub.s32 1, %s4
  %s7 = scalar_select 0, %s6, %s4
  $region1: #{tpu_custom_call.1} parent=0
    #allocation2 [shape = 'u8[8192]{0}', space=vmem, size = 0x2000, scoped, tag = 'input window, operand 0, single buffered']
    #allocation3 [shape = 's32[1]{0}', space=sflag, size = 0x4, scoped, tag = 'scoped memory for tpu_custom_call.1']
    #allocation4 [shape = 's32[1]{0}', space=sflag, size = 0x4, scoped, tag = 'scoped memory for tpu_custom_call.1']
    #allocation5 [shape = 'u8[512]{0}', space=smem, size = 0x200, scoped, tag = 'input window, operand 2, single buffered']
    %8 = vsyncpa [#allocation3], 0
    %9 = vsyncpa [#allocation4], 0
    // Predicated region
    $region2: #{tpu_custom_call.1} parent=1 // pred_check
      _
    $region3: #{tpu_custom_call.1} parent=1 // pred_check_branch
      %11 = sbr.rel (0) target = $region5
    $region4: #{tpu_custom_call.1} parent=1 // pred_region
      %s13 = ssub.s32 256, 256
      %14 = vsyncadd [#allocation3], %s13
      %s15 = sshll.u32 [#allocation2], 4
      %s16 = int_to_ptr.vmem [resolvable:$true] %s15
      %21 = dma.hbm_to_vmem [thread:$0]  %s0, 256, %s16, [#allocation3], 128, 128, 8
    $region5: #{tpu_custom_call.1} parent=1 // pred_fallthru
      _
    // Predicated region
    $region6: #{tpu_custom_call.1} parent=1 // pred_check
      _
    $region7: #{tpu_custom_call.1} parent=1 // pred_check_branch
      %23 = sbr.rel (0) target = $region9
    $region8: #{tpu_custom_call.1} parent=1 // pred_region
      _
    $region9: #{tpu_custom_call.1} parent=1 // pred_fallthru
      _
    // Predicated region
    $region10: #{tpu_custom_call.1} parent=1 // pred_check
      _
    $region11: #{tpu_custom_call.1} parent=1 // pred_check_branch
      %25 = sbr.rel (0) target = $region13
    $region12: #{tpu_custom_call.1} parent=1 // pred_region
      %s27 = ssub.s32 16, 16
      %28 = vsyncadd [#allocation4], %s27
      %s30 = sshll.u32 %s2, 4
      %s31 = int_to_ptr.vmem [resolvable:$true] %s30
      %33 = dma.vmem_to_smem %s31, 16, [#allocation5], [#allocation4]
    $region13: #{tpu_custom_call.1} parent=1 // pred_fallthru
      _
    // Predicated region
    $region14: #{tpu_custom_call.1} parent=1 // pred_check
      _
    $region15: #{tpu_custom_call.1} parent=1 // pred_check_branch
      %35 = sbr.rel (0) target = $region17
    $region16: #{tpu_custom_call.1} parent=1 // pred_region
      %36 = dma.done [#allocation3], 256
    $region17: #{tpu_custom_call.1} parent=1 // pred_fallthru
      _
    // Predicated region
    $region18: #{tpu_custom_call.1} parent=1 // pred_check
      _
    $region19: #{tpu_custom_call.1} parent=1 // pred_check_branch
      %38 = sbr.rel (0) target = $region21
    $region20: #{tpu_custom_call.1} parent=1 // pred_region
      %39 = dma.done [#allocation4], 16
    $region21: #{tpu_custom_call.1} parent=1 // pred_fallthru
      _
    %40 = sfence
    %v41 = vld [vmem:[#allocation2] sm:$0xff]
    %v42 = vld [vmem:[#allocation2 + $0x8] sm:$0xff]
    %v43 = vld [vmem:[%s1] sm:$0x1]
    %s44 = sld [smem:[#allocation5]]
    %v46 = vlaneseq
    %v47 = vshrl.u32 %v46, 7
    %v48 = vsub.s32 0, %v47
    %v49 = vrot.slane %v43, %v48
    %v51 = vmul.f32 %v41, %v49
    %v52 = vmul.f32 %v42, %v49
    %vm53 = vcmask 261120
    %v54 = vsel %vm53, %v51, 0.0
    %55 = vadd.xlane.f32.xlu0 %v54
    %v56 = vpop.xlane.xlu0 %55
    %v57 = vsel %vm53, %v52, 0.0
    %58 = vadd.xlane.f32.xlu0 %v57
    %v59 = vpop.xlane.xlu0 %58
    %s60 = sld [smem:[#allocation5 + $0x1]]
    %v61 = vsel %vm53, %v41, 0.0
    %62 = vadd.xlane.f32.xlu0 %v61
    %v63 = vpop.xlane.xlu0 %62
    %v64 = vsel %vm53, %v42, 0.0
    %65 = vadd.xlane.f32.xlu0 %v64
    %v66 = vpop.xlane.xlu0 %65
    %v67 = vmul.f32 %v41, %v41
    %v68 = vmul.f32 %v42, %v42
    %v69 = vsel %vm53, %v67, 0.0
    %70 = vadd.xlane.f32.xlu0 %v69
    %v71 = vpop.xlane.xlu0 %70
    %v72 = vsel %vm53, %v68, 0.0
    %73 = vadd.xlane.f32.xlu0 %v72
    %v74 = vpop.xlane.xlu0 %73
    %v75 = vmul.f32 %v63, 0.03125
    %v76 = vmul.f32 %v66, 0.03125
    %v77 = vmul.f32 %v71, 0.03125
    %v78 = vmul.f32 %v74, 0.03125
    %v79 = vmul.f32 %v75, %v75
    %v80 = vmul.f32 %v76, %v76
    %v81 = vsub.f32 %v77, %v79
    %v82 = vsub.f32 %v78, %v80
    %v83 = vmax.f32 %v81, 0.0
    %v84 = vmax.f32 %v82, 0.0
    %v85 = vadd.f32 %v83, 1e-05
    %v86 = vadd.f32 %v84, 1e-05
    %v87 = vrsqrt.pop %v85
    %v88 = vrsqrt.pop %v86
    %v89 = vstv %s60
    %v90 = vmul.f32 %v75, %v89
    %v91 = vmul.f32 %v76, %v89
    %v92 = vsub.f32 %v56, %v90
    %v93 = vsub.f32 %v59, %v91
    %v94 = vmul.f32 %v87, %v92
    %v95 = vmul.f32 %v88, %v93
    %v96 = vstv %s44
    %v97 = vadd.f32 %v94, %v96
    %v98 = vadd.f32 %v95, %v96
    %v99 = vsub.f32 0.0, %v97
    %v100 = vsub.f32 0.0, %v98
    %v101 = vxor.u32 %v99, 2147483648
    %v102 = vxor.u32 %v100, 2147483648
    %v103 = vmul.f32 %v101, 1.442695
    %v104 = vpow.pop %v103
    %v105 = vmul.f32 %v102, 1.442695
    %v106 = vpow.pop %v105
    %v107 = vadd.f32 %v104, 1.0
    %v108 = vadd.f32 %v106, 1.0
    %v109 = vrcp.pop %v107
    %v110 = vmul.f32 1.0, %v109
    %v111 = vrcp.pop %v108
    %v112 = vmul.f32 1.0, %v111
    %v113 = vmul.f32 %v110, -30.0
    %v114 = vmul.f32 %v112, -30.0
    %vm115 = vcmask 7168
    %v116 = vsel %vm115, %v113, %v97
    %v117 = vsel %vm115, %v114, %v98
    %vm118 = vcmask 15360
    %119 = vst.msk [vmem:[%s3] sm:$0xff] %vm118, %v116
    %120 = vst.msk [vmem:[%s3 + $0x8] sm:$0xff] %vm118, %v117
    // Predicated region
    $region22: #{tpu_custom_call.1} parent=1 // pred_check
      _
    $region23: #{tpu_custom_call.1} parent=1 // pred_check_branch
      %122 = sbr.rel (0) target = $region25
    $region24: #{tpu_custom_call.1} parent=1 // pred_region
      _
    $region25: #{tpu_custom_call.1} parent=1 // pred_fallthru
      _
    // Predicated region
    $region26: #{tpu_custom_call.1} parent=1 // pred_check
      _
    $region27: #{tpu_custom_call.1} parent=1 // pred_check_branch
      %124 = sbr.rel (0) target = $region29
    $region28: #{tpu_custom_call.1} parent=1 // pred_region
      _
    $region29: #{tpu_custom_call.1} parent=1 // pred_fallthru
      _
    %125 = vsyncpa [#allocation3], 1
    %126 = vsyncpa [#allocation4], 1

</llo_original>
